<compile_context>
chip_gen: v7x
topology: tpu7x:2x2x1
jax: 0.10.0
libtpu: 0.0.40
codegen_flags: <defaults>
</compile_context>

<pallas_src>
import jax
import jax.numpy as jnp
from jax.experimental import pallas as pl
from jax.experimental.pallas import tpu as pltpu


def _make_fuse_kernel(use_mxu):
    def _fuse_kernel(x_ref, res_ref, gw_ref, bw_ref, consts_ref, out_ref):
        x = x_ref[0]                        # (Cx, tile_hw)
        res = res_ref[0]                    # (Cr, tile_hw)
        consts = consts_ref[...]            # (Cr, 5)

        scale = consts[:, 0:1]              # BN: 1/sqrt(var+eps)
        shift = consts[:, 1:2]              # BN: -mean/sqrt(var+eps)
        c1 = consts[:, 2:3]                 # bn_scale*(affine_gamma+1)
        c0 = consts[:, 3:4]                 # bn_shift*(affine_gamma+1)+affine_beta
        aw = consts[:, 4:5]                 # alpha conv weight, (Cr, 1)

        # BatchNorm (eval) folded into per-channel scale/shift.
        res_n = res * scale + shift                       # (Cr, tile_hw)

        if use_mxu:
            # 1x1 convs as channel matmuls on the MXU (general channel counts).
            gamma = jnp.dot(gw_ref[...], x,
                            preferred_element_type=jnp.float32) + 1.0
            beta = jnp.dot(bw_ref[...], x,
                           preferred_element_type=jnp.float32)
        else:
            # Tiny Cin: statically unrolled VPU broadcast-FMA, exact f32.
            gw = gw_ref[...]                # (Cr, Cx)
            bw = bw_ref[...]
            cx = gw.shape[1]
            gamma = jnp.full(res_n.shape, 1.0, dtype=jnp.float32)  # '+1' folded in
            beta = jnp.zeros(res_n.shape, dtype=jnp.float32)
            for ci in range(cx):
                xr = x[ci:ci + 1, :]        # (1, tile_hw)
                gamma = gamma + gw[:, ci:ci + 1] * xr
                beta = beta + bw[:, ci:ci + 1] * xr

        out0 = res_n * gamma + beta
        out1 = res * c1 + c0

        # alpha: 1x1 conv (Cr -> 1) as a sublane reduction -> lane-dense (1, tile_hw).
        alpha = jax.nn.sigmoid(jnp.sum(aw * res_n, axis=0, keepdims=True))

        # (1-alpha)*out0 + alpha*out1
        out_ref[0] = out0 + alpha * (out1 - out0)

    return _fuse_kernel


def _pick_tile_hw(hw, target=2048):
    """Largest multiple-of-128 divisor of hw that is <= target; else hw itself."""
    best = None
    t = 128
    while t <= min(target, hw):
        if hw % t == 0:
            best = t
        t += 128
    return best if best is not None else hw


def fuse_block_pallas(x_nchw, res_nchw, gamma_w, beta_w, alpha_w,
                      affine_gamma, affine_beta, running_mean, running_var,
                      *, eps=1e-5, tile_hw_target=2048):
    N, Cx, H, W = x_nchw.shape
    _, Cr, _, _ = res_nchw.shape
    HW = H * W
    f32 = jnp.float32

    # Pure reshapes of NCHW (zero data movement): channels on sublanes,
    # pixels lane-dense on the last axis.
    x3 = x_nchw.reshape(N, Cx, HW)
    r3 = res_nchw.reshape(N, Cr, HW)

    tile_hw = _pick_tile_hw(HW, tile_hw_target)
    grid = (N, HW // tile_hw)

    # Constant folding (done once in the wrapper, not per grid step):
    bn_scale = 1.0 / jnp.sqrt(running_var.astype(f32) + eps)
    bn_shift = -running_mean.astype(f32) * bn_scale
    ag1 = affine_gamma.reshape(Cr).astype(f32) + 1.0
    ab = affine_beta.reshape(Cr).astype(f32)
    c1 = bn_scale * ag1
    c0 = bn_shift * ag1 + ab
    aw = alpha_w.reshape(Cr).astype(f32)
    consts = jnp.stack([bn_scale, bn_shift, c1, c0, aw], axis=1)   # (Cr, 5)

    # PyTorch conv weights are (Cout, Cin, 1, 1) -> (Cr, Cx); used as-is (weight
    # on the left of the matmul), no transpose needed.
    gw = gamma_w.reshape(Cr, Cx).astype(f32)
    bw = beta_w.reshape(Cr, Cx).astype(f32)

    use_mxu = Cx > 8

    P = N * HW
    cost = pl.CostEstimate(
        flops=4 * P * Cx * Cr + 12 * P * Cr,
        transcendentals=P,
        bytes_accessed=4 * (P * Cx + 2 * P * Cr) + 4 * (2 * Cr * Cx + 5 * Cr),
    )

    out3 = pl.pallas_call(
        _make_fuse_kernel(use_mxu),
        out_shape=jax.ShapeDtypeStruct((N, Cr, HW), f32),
        grid_spec=pltpu.PrefetchScalarGridSpec(
            num_scalar_prefetch=0,
            grid=grid,
            in_specs=[
                pl.BlockSpec((1, Cx, tile_hw), lambda n, j: (n, 0, j)),  # x
                pl.BlockSpec((1, Cr, tile_hw), lambda n, j: (n, 0, j)),  # res
                pl.BlockSpec((Cr, Cx), lambda n, j: (0, 0)),             # gamma weight
                pl.BlockSpec((Cr, Cx), lambda n, j: (0, 0)),             # beta weight
                pl.BlockSpec((Cr, 5), lambda n, j: (0, 0)),              # folded consts
            ],
            out_specs=pl.BlockSpec((1, Cr, tile_hw), lambda n, j: (n, 0, j)),
        ),
        compiler_params=pltpu.CompilerParams(
            dimension_semantics=("parallel", "parallel")),
        cost_estimate=cost,
    )(x3, r3, gw, bw, consts)

    return out3.reshape(N, Cr, H, W)


def _reference(x, res, gamma_w, beta_w, alpha_w, affine_gamma, affine_beta,
               running_mean, running_var, eps=1e-5):
    Cr, Cx = gamma_w.shape[:2]
    hp = jax.lax.Precision.HIGHEST
    rn = (res - running_mean[None, :, None, None]) * jax.lax.rsqrt(
        running_var[None, :, None, None] + eps)
    gamma = jnp.einsum('oi,nihw->nohw', gamma_w.reshape(Cr, Cx), x,
                       precision=hp) + 1.0
    beta = jnp.einsum('oi,nihw->nohw', beta_w.reshape(Cr, Cx), x, precision=hp)
    out0 = rn * gamma + beta
    out1 = rn * (affine_gamma + 1.0) + affine_beta
    alpha = jax.nn.sigmoid(
        jnp.einsum('oi,nihw->nohw', alpha_w.reshape(1, Cr), rn, precision=hp))
    return (1.0 - alpha) * out0 + alpha * out1


if __name__ == "__main__":
    N, x_dim, res_dim, H, W = 2, 4, 8, 16, 16
    eps = 1e-5

    key = jax.random.PRNGKey(0)
    kx, kr, kg, kb, ka, kag, kab, km, kv = jax.random.split(key, 9)

    x = jax.random.normal(kx, (N, x_dim, H, W), dtype=jnp.float32)
    res = jax.random.normal(kr, (N, res_dim, H, W), dtype=jnp.float32)

    # NOTE: the module zero-inits gamma/beta conv weights and the affine params
    # (which would make out0 == res_n trivially); random values are used here so
    # the correctness check exercises every path of the kernel.
    gamma_w = 0.2 * jax.random.normal(kg, (res_dim, x_dim, 1, 1), dtype=jnp.float32)
    beta_w = 0.2 * jax.random.normal(kb, (res_dim, x_dim, 1, 1), dtype=jnp.float32)
    alpha_w = 0.5 * jax.random.normal(ka, (1, res_dim, 1, 1), dtype=jnp.float32)
    affine_gamma = 0.1 * jax.random.normal(kag, (1, res_dim, 1, 1), dtype=jnp.float32)
    affine_beta = 0.1 * jax.random.normal(kab, (1, res_dim, 1, 1), dtype=jnp.float32)
    running_mean = 0.1 * jax.random.normal(km, (res_dim,), dtype=jnp.float32)
    running_var = jax.random.uniform(kv, (res_dim,), dtype=jnp.float32,
                                     minval=0.5, maxval=1.5)

    out = fuse_block_pallas(x, res, gamma_w, beta_w, alpha_w,
                            affine_gamma, affine_beta,
                            running_mean, running_var, eps=eps)
    out = jax.block_until_ready(out)

    ref = _reference(x, res, gamma_w, beta_w, alpha_w,
                     affine_gamma, affine_beta, running_mean, running_var, eps=eps)

    assert out.shape == (N, res_dim, H, W)
    max_err = float(jnp.max(jnp.abs(out - ref)))
    assert jnp.allclose(out, ref, atol=1e-4, rtol=1e-4), f"mismatch vs reference: {max_err}"

    print("KERNEL_OK")
</pallas_src>

<mosaic_0001>
module attributes {stable_mosaic.version = 11 : i64} {
  func.func @_fuse_kernel(%arg0: i32, %arg1: i32, %arg2: memref<1x4x256xf32, #tpu.memory_space<vmem>>, %arg3: memref<1x8x256xf32, #tpu.memory_space<vmem>>, %arg4: memref<8x4xf32, #tpu.memory_space<vmem>>, %arg5: memref<8x4xf32, #tpu.memory_space<vmem>>, %arg6: memref<8x5xf32, #tpu.memory_space<vmem>>, %arg7: memref<1x8x256xf32, #tpu.memory_space<vmem>>) attributes {dimension_semantics = [#tpu.dimension_semantics<parallel>, #tpu.dimension_semantics<parallel>], iteration_bounds = array<i64: 2, 1>, scalar_prefetch = 0 : i64, scratch_operands = 0 : i64, tpu.core_type = #tpu.core_type<tc>, window_params = [{transform_indices = @transform_0, window_bounds = array<i64: 1, 4, 256>}, {transform_indices = @transform_1, window_bounds = array<i64: 1, 8, 256>}, {pipeline_mode = #tpu.pipeline_mode<synchronous>, transform_indices = @transform_2, window_bounds = array<i64: 8, 4>}, {pipeline_mode = #tpu.pipeline_mode<synchronous>, transform_indices = @transform_3, window_bounds = array<i64: 8, 4>}, {pipeline_mode = #tpu.pipeline_mode<synchronous>, transform_indices = @transform_4, window_bounds = array<i64: 8, 5>}, {transform_indices = @transform_5, window_bounds = array<i64: 1, 8, 256>}]} {
    %c0 = arith.constant 0 : index
    %c0_0 = arith.constant 0 : index
    %c0_1 = arith.constant 0 : index
    %0 = vector.load %arg2[%c0, %c0_0, %c0_1] : memref<1x4x256xf32, #tpu.memory_space<vmem>>, vector<1x4x256xf32>
    %1 = vector.shape_cast %0 : vector<1x4x256xf32> to vector<4x256xf32>
    %c0_2 = arith.constant 0 : index
    %c0_3 = arith.constant 0 : index
    %c0_4 = arith.constant 0 : index
    %2 = vector.load %arg3[%c0_2, %c0_3, %c0_4] : memref<1x8x256xf32, #tpu.memory_space<vmem>>, vector<1x8x256xf32>
    %3 = vector.shape_cast %2 : vector<1x8x256xf32> to vector<8x256xf32>
    %c0_5 = arith.constant 0 : index
    %c0_6 = arith.constant 0 : index
    %4 = vector.load %arg6[%c0_5, %c0_6] : memref<8x5xf32, #tpu.memory_space<vmem>>, vector<8x5xf32>
    %5 = vector.extract_strided_slice %4 {offsets = [0, 0], sizes = [8, 1], strides = [1, 1]} : vector<8x5xf32> to vector<8x1xf32>
    %6 = vector.extract_strided_slice %4 {offsets = [0, 1], sizes = [8, 1], strides = [1, 1]} : vector<8x5xf32> to vector<8x1xf32>
    %7 = vector.extract_strided_slice %4 {offsets = [0, 2], sizes = [8, 1], strides = [1, 1]} : vector<8x5xf32> to vector<8x1xf32>
    %8 = vector.extract_strided_slice %4 {offsets = [0, 3], sizes = [8, 1], strides = [1, 1]} : vector<8x5xf32> to vector<8x1xf32>
    %9 = vector.extract_strided_slice %4 {offsets = [0, 4], sizes = [8, 1], strides = [1, 1]} : vector<8x5xf32> to vector<8x1xf32>
    %10 = vector.broadcast %5 : vector<8x1xf32> to vector<8x256xf32>
    %11 = arith.mulf %3, %10 : vector<8x256xf32>
    %12 = vector.broadcast %6 : vector<8x1xf32> to vector<8x256xf32>
    %13 = arith.addf %11, %12 : vector<8x256xf32>
    %c0_7 = arith.constant 0 : index
    %c0_8 = arith.constant 0 : index
    %14 = vector.load %arg4[%c0_7, %c0_8] : memref<8x4xf32, #tpu.memory_space<vmem>>, vector<8x4xf32>
    %c0_9 = arith.constant 0 : index
    %c0_10 = arith.constant 0 : index
    %15 = vector.load %arg5[%c0_9, %c0_10] : memref<8x4xf32, #tpu.memory_space<vmem>>, vector<8x4xf32>
    %cst = arith.constant 1.000000e+00 : f32
    %16 = vector.broadcast %cst : f32 to vector<8x256xf32>
    %cst_11 = arith.constant 0.000000e+00 : f32
    %17 = vector.broadcast %cst_11 : f32 to vector<8x256xf32>
    %18 = vector.extract_strided_slice %1 {offsets = [0, 0], sizes = [1, 256], strides = [1, 1]} : vector<4x256xf32> to vector<1x256xf32>
    %19 = vector.extract_strided_slice %14 {offsets = [0, 0], sizes = [8, 1], strides = [1, 1]} : vector<8x4xf32> to vector<8x1xf32>
    %20 = vector.broadcast %19 : vector<8x1xf32> to vector<8x256xf32>
    %21 = vector.broadcast %18 : vector<1x256xf32> to vector<8x256xf32>
    %22 = arith.mulf %20, %21 : vector<8x256xf32>
    %23 = arith.addf %16, %22 : vector<8x256xf32>
    %24 = vector.extract_strided_slice %15 {offsets = [0, 0], sizes = [8, 1], strides = [1, 1]} : vector<8x4xf32> to vector<8x1xf32>
    %25 = vector.broadcast %24 : vector<8x1xf32> to vector<8x256xf32>
    %26 = vector.broadcast %18 : vector<1x256xf32> to vector<8x256xf32>
    %27 = arith.mulf %25, %26 : vector<8x256xf32>
    %28 = arith.addf %17, %27 : vector<8x256xf32>
    %29 = vector.extract_strided_slice %1 {offsets = [1, 0], sizes = [1, 256], strides = [1, 1]} : vector<4x256xf32> to vector<1x256xf32>
    %30 = vector.extract_strided_slice %14 {offsets = [0, 1], sizes = [8, 1], strides = [1, 1]} : vector<8x4xf32> to vector<8x1xf32>
    %31 = vector.broadcast %30 : vector<8x1xf32> to vector<8x256xf32>
    %32 = vector.broadcast %29 : vector<1x256xf32> to vector<8x256xf32>
    %33 = arith.mulf %31, %32 : vector<8x256xf32>
    %34 = arith.addf %23, %33 : vector<8x256xf32>
    %35 = vector.extract_strided_slice %15 {offsets = [0, 1], sizes = [8, 1], strides = [1, 1]} : vector<8x4xf32> to vector<8x1xf32>
    %36 = vector.broadcast %35 : vector<8x1xf32> to vector<8x256xf32>
    %37 = vector.broadcast %29 : vector<1x256xf32> to vector<8x256xf32>
    %38 = arith.mulf %36, %37 : vector<8x256xf32>
    %39 = arith.addf %28, %38 : vector<8x256xf32>
    %40 = vector.extract_strided_slice %1 {offsets = [2, 0], sizes = [1, 256], strides = [1, 1]} : vector<4x256xf32> to vector<1x256xf32>
    %41 = vector.extract_strided_slice %14 {offsets = [0, 2], sizes = [8, 1], strides = [1, 1]} : vector<8x4xf32> to vector<8x1xf32>
    %42 = vector.broadcast %41 : vector<8x1xf32> to vector<8x256xf32>
    %43 = vector.broadcast %40 : vector<1x256xf32> to vector<8x256xf32>
    %44 = arith.mulf %42, %43 : vector<8x256xf32>
    %45 = arith.addf %34, %44 : vector<8x256xf32>
    %46 = vector.extract_strided_slice %15 {offsets = [0, 2], sizes = [8, 1], strides = [1, 1]} : vector<8x4xf32> to vector<8x1xf32>
    %47 = vector.broadcast %46 : vector<8x1xf32> to vector<8x256xf32>
    %48 = vector.broadcast %40 : vector<1x256xf32> to vector<8x256xf32>
    %49 = arith.mulf %47, %48 : vector<8x256xf32>
    %50 = arith.addf %39, %49 : vector<8x256xf32>
    %51 = vector.extract_strided_slice %1 {offsets = [3, 0], sizes = [1, 256], strides = [1, 1]} : vector<4x256xf32> to vector<1x256xf32>
    %52 = vector.extract_strided_slice %14 {offsets = [0, 3], sizes = [8, 1], strides = [1, 1]} : vector<8x4xf32> to vector<8x1xf32>
    %53 = vector.broadcast %52 : vector<8x1xf32> to vector<8x256xf32>
    %54 = vector.broadcast %51 : vector<1x256xf32> to vector<8x256xf32>
    %55 = arith.mulf %53, %54 : vector<8x256xf32>
    %56 = arith.addf %45, %55 : vector<8x256xf32>
    %57 = vector.extract_strided_slice %15 {offsets = [0, 3], sizes = [8, 1], strides = [1, 1]} : vector<8x4xf32> to vector<8x1xf32>
    %58 = vector.broadcast %57 : vector<8x1xf32> to vector<8x256xf32>
    %59 = vector.broadcast %51 : vector<1x256xf32> to vector<8x256xf32>
    %60 = arith.mulf %58, %59 : vector<8x256xf32>
    %61 = arith.addf %50, %60 : vector<8x256xf32>
    %62 = arith.mulf %13, %56 : vector<8x256xf32>
    %63 = arith.addf %62, %61 : vector<8x256xf32>
    %64 = vector.broadcast %7 : vector<8x1xf32> to vector<8x256xf32>
    %65 = arith.mulf %3, %64 : vector<8x256xf32>
    %66 = vector.broadcast %8 : vector<8x1xf32> to vector<8x256xf32>
    %67 = arith.addf %65, %66 : vector<8x256xf32>
    %68 = vector.broadcast %9 : vector<8x1xf32> to vector<8x256xf32>
    %69 = arith.mulf %68, %13 : vector<8x256xf32>
    %cst_12 = arith.constant dense<0.000000e+00> : vector<256xf32>
    %70 = vector.multi_reduction <add>, %69, %cst_12 [0] : vector<8x256xf32> to vector<256xf32>
    %71 = vector.shape_cast %70 : vector<256xf32> to vector<1x256xf32>
    %72 = arith.negf %71 : vector<1x256xf32>
    %73 = math.exp %72 : vector<1x256xf32>
    %cst_13 = arith.constant 1.000000e+00 : f32
    %74 = vector.broadcast %cst_13 : f32 to vector<1x256xf32>
    %75 = arith.addf %74, %73 : vector<1x256xf32>
    %76 = arith.divf %74, %75 : vector<1x256xf32>
    %77 = arith.subf %67, %63 : vector<8x256xf32>
    %78 = vector.broadcast %76 : vector<1x256xf32> to vector<8x256xf32>
    %79 = arith.mulf %78, %77 : vector<8x256xf32>
    %80 = arith.addf %63, %79 : vector<8x256xf32>
    %c0_14 = arith.constant 0 : index
    %c0_15 = arith.constant 0 : index
    %c0_16 = arith.constant 0 : index
    %81 = vector.load %arg7[%c0_14, %c0_15, %c0_16] : memref<1x8x256xf32, #tpu.memory_space<vmem>>, vector<1x8x256xf32>
    %82 = vector.shape_cast %81 : vector<1x8x256xf32> to vector<8x256xf32>
    %83 = vector.shape_cast %80 : vector<8x256xf32> to vector<1x8x256xf32>
    tpu.vector_store %arg7[%c0_14, %c0_15, %c0_16], %83 {strides = array<i32>} : memref<1x8x256xf32, #tpu.memory_space<vmem>>, vector<1x8x256xf32>,
    return
  }
  func.func @transform_0(%arg0: i32, %arg1: i32) -> (i32, i32, i32) {
    %c0_i32 = arith.constant 0 : i32
    %c0_i32_0 = arith.constant 0 : i32
    return %arg0, %c0_i32, %arg1 : i32, i32, i32
  }
  func.func @transform_1(%arg0: i32, %arg1: i32) -> (i32, i32, i32) {
    %c0_i32 = arith.constant 0 : i32
    %c0_i32_0 = arith.constant 0 : i32
    return %arg0, %c0_i32, %arg1 : i32, i32, i32
  }
  func.func @transform_2(%arg0: i32, %arg1: i32) -> (i32, i32) {
    %c0_i32 = arith.constant 0 : i32
    %c0_i32_0 = arith.constant 0 : i32
    %c0_i32_1 = arith.constant 0 : i32
    return %c0_i32, %c0_i32_0 : i32, i32
  }
  func.func @transform_3(%arg0: i32, %arg1: i32) -> (i32, i32) {
    %c0_i32 = arith.constant 0 : i32
    %c0_i32_0 = arith.constant 0 : i32
    %c0_i32_1 = arith.constant 0 : i32
    return %c0_i32, %c0_i32_0 : i32, i32
  }
  func.func @transform_4(%arg0: i32, %arg1: i32) -> (i32, i32) {
    %c0_i32 = arith.constant 0 : i32
    %c0_i32_0 = arith.constant 0 : i32
    %c0_i32_1 = arith.constant 0 : i32
    return %c0_i32, %c0_i32_0 : i32, i32
  }
  func.func @transform_5(%arg0: i32, %arg1: i32) -> (i32, i32, i32) {
    %c0_i32 = arith.constant 0 : i32
    %c0_i32_0 = arith.constant 0 : i32
    return %arg0, %c0_i32, %arg1 : i32, i32, i32
  }
}

</mosaic_0001>

<llo_original>
// kernel: tpu_custom_call.1
$region0: #{tpu_custom_call.1}
  #allocation0 [shape = 'u32[]', space=smem, size = 0x4, offset = 0x4, fixed_abs, tag = 'smem constant byte address 0x4 - core index']
  #allocation1 [shape = 'u32[144,128]{1,0:T(1,128)}', space=vmem, size = 0x12000, scoped, tag = 'internal scratch']
  %s0 = inlined_call_operand.vmem [shape: f32[2,4,256], index: 0, kind: input, shape index: {}]
  %s1 = inlined_call_operand.hbm [shape: f32[2,8,256], index: 1, kind: input, shape index: {}]
  %s2 = inlined_call_operand.vmem [shape: f32[8,4], index: 2, kind: input, shape index: {}]
  %s3 = inlined_call_operand.vmem [shape: f32[8,4], index: 3, kind: input, shape index: {}]
  %s4 = inlined_call_operand.vmem [shape: f32[8,5], index: 4, kind: input, shape index: {}]
  %s5 = inlined_call_operand.hbm [shape: f32[2,8,256], index: 5, kind: output, shape index: {}]
  %s6 = sld [smem:[#allocation0]]
  $region57: #{tpu_custom_call.1} parent=0
    _
  %s8 = ssub.s32 1, %s6
  %s9 = scalar_select 0, %s8, %s6
  $region1: #{tpu_custom_call.1} parent=0
    #allocation2 [shape = 'u8[16384]{0}', space=vmem, size = 0x4000, scoped, tag = 'input window, operand 1']
    #allocation3 [shape = 's32[2]{0}', space=sflag, size = 0x8, scoped, tag = 'scoped memory for tpu_custom_call.1']
    #allocation4 [shape = 's32[2]{0}', space=sflag, size = 0x8, scoped, tag = 'scoped memory for tpu_custom_call.1']
    #allocation5 [shape = 'u8[16384]{0}', space=vmem, size = 0x4000, scoped, tag = 'output window, operand 0']
    %10 = vsyncpa [#allocation3], 0
    %s11 = scalar_lea.sflag [#allocation3], 1
    %12 = vsyncpa %s11, 0
    %13 = vsyncpa [#allocation4], 0
    %s14 = scalar_lea.sflag [#allocation4], 1
    %15 = vsyncpa %s14, 0
    loop: start=0, step=1, limit=4
    $region2: #{tpu_custom_call.1} parent=1 // loop_pre_header
      _
    $region3: #{tpu_custom_call.1} parent=1 // loop_header
      %s17 = sphi 0, %s21
      %p18 = scmp.ge.s32.totalorder %s17, 4
      %s24 = sphi 0, %s36
      %s25 = sphi 0, %s32
      %s26 = sphi 0, %s24
      %s27 = sphi 0, %s25
      %s28 = sphi 0, %s26
      %s29 = sphi 0, %s27
      %s41 = sphi 0, %s43
      %s44 = sphi 0, %s41
      %s45 = sphi 0, %s44
      %s61 = sphi 0, %s45
      %s69 = sphi 0, %s71
      %s72 = sphi 0, %s69
      %s73 = sphi 0, %s72
      %s89 = sphi 0, %s73
      %s93 = sphi 0, %s93
      %s95 = sphi 0, %s93
      %s96 = sphi 0, %s95
      %s110 = sphi 0, %s96
      %s114 = sphi 0, %s114
      %s116 = sphi 0, %s114
      %s117 = sphi 0, %s116
      %s131 = sphi 0, %s117
      %s135 = sphi 0, %s135
      %s137 = sphi 0, %s135
      %s138 = sphi 0, %s137
      %s152 = sphi 0, %s138
      %s160 = sphi 0, %s162
      %s163 = sphi 0, %s160
      %s164 = sphi 0, %s163
      %s180 = sphi 0, %s164
    $region4: #{tpu_custom_call.1} parent=1 // loop_header_branch
      %20 = sbr.rel (%p18) target = $region8
    $region5: #{tpu_custom_call.1} parent=1 // loop_body
      %s22 = ssub.s32 %s17, 1
      %s23 = ssub.s32 %s17, 2
      %s30 = sadd.s32 1, %s25
      %p31 = scmp.ge.s32.totalorder %s30, 1
      %s32 = scalar_select %p31, 0, %s30
      %s33 = sadd.s32 1, %s24
      %s34 = scalar_select %p31, %s33, %s24
      %p35 = scmp.ge.s32.totalorder %s34, 2
      %s36 = scalar_select %p35, 0, %s34
      %s37 = ssub.s32 %s24, %s36
      %s38 = ssub.s32 %s25, %s32
      %s39 = sor.u32 %s37, %s38
      %p40 = scmp.eq.s32.totalorder %s39, 0
      %s42 = sadd.s32 %s41, 1
      %s43 = scalar_select %p40, %s41, %s42
      %p46 = pneg %p40
      %p47 = scmp.eq.s32.totalorder %s17, 1
      %p48 = por %p46, %p47
      %p49 = scmp.ne.s32.totalorder %s41, %s44
      %p50 = scmp.eq.s32.totalorder %s17, 0
      %p51 = por %p49, %p50
      %p52 = scmp.ne.s32.totalorder %s41, %s44
      %p53 = scmp.eq.s32.totalorder %s22, 1
      %p54 = por %p52, %p53
      %p55 = scmp.ne.s32.totalorder %s44, %s45
      %p56 = scmp.eq.s32.totalorder %s22, 0
      %p57 = por %p55, %p56
      %p58 = scmp.ne.s32.totalorder %s44, %s45
      %p59 = scmp.eq.s32.totalorder %s23, 1
      %p60 = por %p58, %p59
      %p62 = scmp.ne.s32.totalorder %s45, %s61
      %p63 = scmp.eq.s32.totalorder %s23, 0
      %p64 = por %p62, %p63
      %s65 = ssub.s32 %s24, %s36
      %s66 = ssub.s32 %s25, %s32
      %s67 = sor.u32 %s65, %s66
      %p68 = scmp.eq.s32.totalorder %s67, 0
      %s70 = sadd.s32 %s69, 1
      %s71 = scalar_select %p68, %s69, %s70
      %p74 = pneg %p68
      %p75 = scmp.eq.s32.totalorder %s17, 1
      %p76 = por %p74, %p75
      %p77 = scmp.ne.s32.totalorder %s69, %s72
      %p78 = scmp.eq.s32.totalorder %s17, 0
      %p79 = por %p77, %p78
      %p80 = scmp.ne.s32.totalorder %s69, %s72
      %p81 = scmp.eq.s32.totalorder %s22, 1
      %p82 = por %p80, %p81
      %p83 = scmp.ne.s32.totalorder %s72, %s73
      %p84 = scmp.eq.s32.totalorder %s22, 0
      %p85 = por %p83, %p84
      %p86 = scmp.ne.s32.totalorder %s72, %s73
      %p87 = scmp.eq.s32.totalorder %s23, 1
      %p88 = por %p86, %p87
      %p90 = scmp.ne.s32.totalorder %s73, %s89
      %p91 = scmp.eq.s32.totalorder %s23, 0
      %p92 = por %p90, %p91
      %s94 = sadd.s32 %s93, 1
      %p97 = scmp.eq.s32.totalorder %s17, 1
      %p98 = scmp.ne.s32.totalorder %s93, %s95
      %p99 = scmp.eq.s32.totalorder %s17, 0
      %p100 = por %p98, %p99
      %p101 = scmp.ne.s32.totalorder %s93, %s95
      %p102 = scmp.eq.s32.totalorder %s22, 1
      %p103 = por %p101, %p102
      %p104 = scmp.ne.s32.totalorder %s95, %s96
      %p105 = scmp.eq.s32.totalorder %s22, 0
      %p106 = por %p104, %p105
      %p107 = scmp.ne.s32.totalorder %s95, %s96
      %p108 = scmp.eq.s32.totalorder %s23, 1
      %p109 = por %p107, %p108
      %p111 = scmp.ne.s32.totalorder %s96, %s110
      %p112 = scmp.eq.s32.totalorder %s23, 0
      %p113 = por %p111, %p112
      %s115 = sadd.s32 %s114, 1
      %p118 = scmp.eq.s32.totalorder %s17, 1
      %p119 = scmp.ne.s32.totalorder %s114, %s116
      %p120 = scmp.eq.s32.totalorder %s17, 0
      %p121 = por %p119, %p120
      %p122 = scmp.ne.s32.totalorder %s114, %s116
      %p123 = scmp.eq.s32.totalorder %s22, 1
      %p124 = por %p122, %p123
      %p125 = scmp.ne.s32.totalorder %s116, %s117
      %p126 = scmp.eq.s32.totalorder %s22, 0
      %p127 = por %p125, %p126
      %p128 = scmp.ne.s32.totalorder %s116, %s117
      %p129 = scmp.eq.s32.totalorder %s23, 1
      %p130 = por %p128, %p129
      %p132 = scmp.ne.s32.totalorder %s117, %s131
      %p133 = scmp.eq.s32.totalorder %s23, 0
      %p134 = por %p132, %p133
      %s136 = sadd.s32 %s135, 1
      %p139 = scmp.eq.s32.totalorder %s17, 1
      %p140 = scmp.ne.s32.totalorder %s135, %s137
      %p141 = scmp.eq.s32.totalorder %s17, 0
      %p142 = por %p140, %p141
      %p143 = scmp.ne.s32.totalorder %s135, %s137
      %p144 = scmp.eq.s32.totalorder %s22, 1
      %p145 = por %p143, %p144
      %p146 = scmp.ne.s32.totalorder %s137, %s138
      %p147 = scmp.eq.s32.totalorder %s22, 0
      %p148 = por %p146, %p147
      %p149 = scmp.ne.s32.totalorder %s137, %s138
      %p150 = scmp.eq.s32.totalorder %s23, 1
      %p151 = por %p149, %p150
      %p153 = scmp.ne.s32.totalorder %s138, %s152
      %p154 = scmp.eq.s32.totalorder %s23, 0
      %p155 = por %p153, %p154
      %s156 = ssub.s32 %s24, %s36
      %s157 = ssub.s32 %s25, %s32
      %s158 = sor.u32 %s156, %s157
      %p159 = scmp.eq.s32.totalorder %s158, 0
      %s161 = sadd.s32 %s160, 1
      %s162 = scalar_select %p159, %s160, %s161
      %p165 = pneg %p159
      %p166 = scmp.eq.s32.totalorder %s17, 1
      %p167 = por %p165, %p166
      %p168 = scmp.ne.s32.totalorder %s160, %s163
      %p169 = scmp.eq.s32.totalorder %s17, 0
      %p170 = por %p168, %p169
      %p171 = scmp.ne.s32.totalorder %s160, %s163
      %p172 = scmp.eq.s32.totalorder %s22, 1
      %p173 = por %p171, %p172
      %p174 = scmp.ne.s32.totalorder %s163, %s164
      %p175 = scmp.eq.s32.totalorder %s22, 0
      %p176 = por %p174, %p175
      %p177 = scmp.ne.s32.totalorder %s163, %s164
      %p178 = scmp.eq.s32.totalorder %s23, 1
      %p179 = por %p177, %p178
      %p181 = scmp.ne.s32.totalorder %s164, %s180
      %p182 = scmp.eq.s32.totalorder %s23, 0
      %p183 = por %p181, %p182
      %p184 = scmp.le.s32.totalorder 1, %s17
      %p185 = scmp.lt.s32.totalorder %s17, 3
      %p186 = pnand %p184, %p185
      %p187 = pneg %p186
      // Predicated region
      $region9: #{tpu_custom_call.1} parent=5 // pred_check
        _
      $region10: #{tpu_custom_call.1} parent=5 // pred_check_branch
        %189 = sbr.rel (%p186) target = $region12
      $region11: #{tpu_custom_call.1} parent=5 // pred_region
        %s190 = ssub.s32 %s17, 1
        // Predicated region
        $region13: #{tpu_custom_call.1} parent=11 // pred_check
          %p191 = pneg %p106
        $region14: #{tpu_custom_call.1} parent=11 // pred_check_branch
          %193 = sbr.rel (%p191) target = $region16
        $region15: #{tpu_custom_call.1} parent=11 // pred_region
          _
        $region16: #{tpu_custom_call.1} parent=11 // pred_fallthru
          _
        // Predicated region
        $region17: #{tpu_custom_call.1} parent=11 // pred_check
          %p194 = pneg %p127
        $region18: #{tpu_custom_call.1} parent=11 // pred_check_branch
          %196 = sbr.rel (%p194) target = $region20
        $region19: #{tpu_custom_call.1} parent=11 // pred_region
          _
        $region20: #{tpu_custom_call.1} parent=11 // pred_fallthru
          _
        // Predicated region
        $region21: #{tpu_custom_call.1} parent=11 // pred_check
          %p197 = pneg %p148
        $region22: #{tpu_custom_call.1} parent=11 // pred_check_branch
          %199 = sbr.rel (%p197) target = $region24
        $region23: #{tpu_custom_call.1} parent=11 // pred_region
          _
        $region24: #{tpu_custom_call.1} parent=11 // pred_fallthru
          _
      $region12: #{tpu_custom_call.1} parent=5 // pred_fallthru
        _
      %p200 = scmp.lt.s32.totalorder %s17, 2
      // Predicated region
      $region25: #{tpu_custom_call.1} parent=5 // pred_check
        %p201 = pneg %p200
      $region26: #{tpu_custom_call.1} parent=5 // pred_check_branch
        %203 = sbr.rel (%p201) target = $region28
      $region27: #{tpu_custom_call.1} parent=5 // pred_region
        // Predicated region
        $region29: #{tpu_custom_call.1} parent=27 // pred_check
          %p204 = pneg %p51
        $region30: #{tpu_custom_call.1} parent=27 // pred_check_branch
          %206 = sbr.rel (%p204) target = $region32
        $region31: #{tpu_custom_call.1} parent=27 // pred_region
          %s207 = smul.u32 2, %s25
          %p208 = scmp.lt.s32.totalorder %s24, 1
          %s209 = scalar_select %p208, %s24, 1
          %p210 = scmp.lt.s32.totalorder %s207, 1
          %s211 = scalar_select %p210, %s207, 1
          %s212 = smul.addr %s209, 2
          %s213 = sadd.s32 %s211, %s212
          %s214 = smul.addr %s213, 4
          %s215 = scalar_lea.vmem %s0, %s214
          %s216 = smul.u32 2, %s25
        $region32: #{tpu_custom_call.1} parent=27 // pred_fallthru
          _
        // Predicated region
        $region33: #{tpu_custom_call.1} parent=27 // pred_check
          %p217 = pneg %p79
        $region34: #{tpu_custom_call.1} parent=27 // pred_check_branch
          %219 = sbr.rel (%p217) target = $region36
        $region35: #{tpu_custom_call.1} parent=27 // pred_region
          %s220 = sand.u32 %s69, 1
          %s221 = scalar_lea.sflag [#allocation3], %s220
          %s222 = sand.u32 %s69, 1
          %s223 = smul.addr %s222, 16
          %s224 = scalar_lea.vmem [#allocation2], %s223
          %s225 = smul.u32 2, %s25
          %s227 = ssub.s32 256, 256
          %228 = vsyncadd %s221, %s227
          %s229 = smul.addr %s24, 2
          %s230 = sadd.s32 %s225, %s229
          %s231 = smul.addr %s230, 128
          %s232 = scalar_lea.hbm %s1, %s231
          %s234 = sshll.u32 %s224, 4
          %s235 = int_to_ptr.vmem [resolvable:$true] %s234
          %237 = dma.hbm_to_vmem [thread:$0]  %s232, 256, %s235, %s221
        $region36: #{tpu_custom_call.1} parent=27 // pred_fallthru
          _
      $region28: #{tpu_custom_call.1} parent=5 // pred_fallthru
        _
      %p238 = scmp.le.s32.totalorder 1, %s17
      %p239 = scmp.lt.s32.totalorder %s17, 3
      %p240 = pnand %p238, %p239
      %p241 = pneg %p240
      // Predicated region
      $region37: #{tpu_custom_call.1} parent=5 // pred_check
        _
      $region38: #{tpu_custom_call.1} parent=5 // pred_check_branch
        %243 = sbr.rel (%p240) target = $region40
      $region39: #{tpu_custom_call.1} parent=5 // pred_region
        %s244 = ssub.s32 %s17, 1
        %s245 = sand.u32 %s72, 1
        %s246 = scalar_lea.sflag [#allocation3], %s245
        %s247 = sand.u32 %s72, 1
        %s248 = smul.addr %s247, 16
        %s249 = scalar_lea.vmem [#allocation2], %s248
        // Predicated region
        $region41: #{tpu_custom_call.1} parent=39 // pred_check
          %p250 = pneg %p85
        $region42: #{tpu_custom_call.1} parent=39 // pred_check_branch
          %252 = sbr.rel (%p250) target = $region44
        $region43: #{tpu_custom_call.1} parent=39 // pred_region
          %253 = dma.done %s246, 256
        $region44: #{tpu_custom_call.1} parent=39 // pred_fallthru
          _
        %s254 = smul.u32 2, %s27
        %p255 = scmp.lt.s32.totalorder %s26, 1
        %s256 = scalar_select %p255, %s26, 1
        %p257 = scmp.lt.s32.totalorder %s254, 1
        %s258 = scalar_select %p257, %s254, 1
        %s259 = smul.addr %s256, 2
        %s260 = sadd.s32 %s258, %s259
        %s261 = smul.addr %s260, 4
        %s262 = scalar_lea.vmem %s0, %s261
        %p263 = pneg %p57
        %p264 = pneg %p54
        %s265 = sand.u32 %s72, 1
        %s266 = scalar_lea.sflag [#allocation3], %s265
        %s267 = sand.u32 %s72, 1
        %s268 = smul.addr %s267, 16
        %s269 = scalar_lea.vmem [#allocation2], %s268
        %p270 = pneg %p85
        %p271 = pneg %p82
        %p272 = pneg %p106
        %p273 = pneg %p103
        %p274 = pneg %p127
        %p275 = pneg %p124
        %p276 = pneg %p148
        %p277 = pneg %p145
        %p278 = pneg %p176
        %p279 = pneg %p173
        %s280 = sand.u32 %s163, 1
        %s281 = scalar_lea.sflag [#allocation4], %s280
        %s282 = sand.u32 %s163, 1
        %s283 = smul.addr %s282, 16
        %s284 = scalar_lea.vmem [#allocation5], %s283
        %s285 = smul.u32 2, %s27
        %p286 = scmp.lt.s32.totalorder %s26, 1
        %s287 = scalar_select %p286, %s26, 1
        %p288 = scmp.lt.s32.totalorder %s285, 1
        %s289 = scalar_select %p288, %s285, 1
        %s290 = smul.addr %s287, 2
        %s291 = sadd.s32 %s289, %s290
        %s292 = smul.addr %s291, 4
        %s293 = scalar_lea.vmem %s0, %s292
        %s294 = smul.u32 2, %s27
        %s295 = smul.u32 2, %s27
        %s296 = smul.u32 2, %s27
        %v297 = vld [vmem:[%s293] sm:$0xff]
        %v298 = vld [vmem:[%s249] sm:$0xff]
        %v299 = vld [vmem:[%s249 + $0x8] sm:$0xff]
        %v300 = vld [vmem:[%s4] sm:$0xff]
        %302 = vset.pattern.permute.xlu0 0
        %303 = vperm.xlu0 %302, %v300
        %v304 = vpop.permute.xlu0 %303
        %v306 = vmul.f32 %v298, %v304
        %v307 = vmul.f32 %v299, %v304
        %308 = vset.pattern.permute.xlu0 1
        %309 = vperm.xlu0 %308, %v300
        %v310 = vpop.permute.xlu0 %309
        %v312 = vadd.f32 %v306, %v310
        %v313 = vadd.f32 %v307, %v310
        %v314 = vld [vmem:[%s2] sm:$0xff]
        %v315 = vld [vmem:[%s3] sm:$0xff]
        %317 = vset.pattern.permute.xlu0 0
        %318 = vperm.xlu0 %317, %v314
        %v319 = vpop.permute.xlu0 %318
        %v322 = vlaneseq
        %v323 = vshrl.u32 %v322, 7
        %v324 = vsub.s32 0, %v323
        %v325 = vrot.slane %v297, %v324
        %v326 = vlaneseq
        %v327 = vshrl.u32 %v326, 7
        %v328 = vsub.s32 4, %v327
        %v329 = vrot.slane %v297, %v328
        %v332 = vlaneseq
        %v333 = vshrl.u32 %v332, 7
        %v334 = vsub.s32 0, %v333
        %v335 = vrot.slane %v325, %v334
        %v336 = vlaneseq
        %v337 = vshrl.u32 %v336, 7
        %v338 = vsub.s32 0, %v337
        %v339 = vrot.slane %v329, %v338
        %v340 = vmul.f32 %v319, %v335
        %v341 = vmul.f32 %v319, %v339
        %v342 = vadd.f32 %v340, 1.0
        %v343 = vadd.f32 %v341, 1.0
        %345 = vset.pattern.permute.xlu0 0
        %346 = vperm.xlu0 %345, %v315
        %v347 = vpop.permute.xlu0 %346
        %v349 = vmul.f32 %v347, %v335
        %v350 = vmul.f32 %v347, %v339
        %v351 = vadd.f32 %v349, 0.0
        %v352 = vadd.f32 %v350, 0.0
        %353 = vset.pattern.permute.xlu0 1
        %354 = vperm.xlu0 %353, %v314
        %v355 = vpop.permute.xlu0 %354
        %v357 = vlaneseq
        %v358 = vshrl.u32 %v357, 7
        %v359 = vsub.s32 1, %v358
        %v360 = vrot.slane %v297, %v359
        %v361 = vlaneseq
        %v362 = vshrl.u32 %v361, 7
        %v363 = vsub.s32 5, %v362
        %v364 = vrot.slane %v297, %v363
        %v367 = vlaneseq
        %v368 = vshrl.u32 %v367, 7
        %v369 = vsub.s32 1, %v368
        %v370 = vrot.slane %v360, %v369
        %v371 = vlaneseq
        %v372 = vshrl.u32 %v371, 7
        %v373 = vsub.s32 1, %v372
        %v374 = vrot.slane %v364, %v373
        %v375 = vmul.f32 %v355, %v370
        %v376 = vmul.f32 %v355, %v374
        %v377 = vadd.f32 %v342, %v375
        %v378 = vadd.f32 %v343, %v376
        %379 = vset.pattern.permute.xlu0 1
        %380 = vperm.xlu0 %379, %v315
        %v381 = vpop.permute.xlu0 %380
        %v383 = vmul.f32 %v381, %v370
        %v384 = vmul.f32 %v381, %v374
        %v385 = vadd.f32 %v351, %v383
        %v386 = vadd.f32 %v352, %v384
        %387 = vset.pattern.permute.xlu0 2
        %388 = vperm.xlu0 %387, %v314
        %v389 = vpop.permute.xlu0 %388
        %v391 = vlaneseq
        %v392 = vshrl.u32 %v391, 7
        %v393 = vsub.s32 2, %v392
        %v394 = vrot.slane %v297, %v393
        %v395 = vlaneseq
        %v396 = vshrl.u32 %v395, 7
        %v397 = vsub.s32 6, %v396
        %v398 = vrot.slane %v297, %v397
        %v401 = vlaneseq
        %v402 = vshrl.u32 %v401, 7
        %v403 = vsub.s32 2, %v402
        %v404 = vrot.slane %v394, %v403
        %v405 = vlaneseq
        %v406 = vshrl.u32 %v405, 7
        %v407 = vsub.s32 2, %v406
        %v408 = vrot.slane %v398, %v407
        %v409 = vmul.f32 %v389, %v404
        %v410 = vmul.f32 %v389, %v408
        %v411 = vadd.f32 %v377, %v409
        %v412 = vadd.f32 %v378, %v410
        %413 = vset.pattern.permute.xlu0 2
        %414 = vperm.xlu0 %413, %v315
        %v415 = vpop.permute.xlu0 %414
        %v417 = vmul.f32 %v415, %v404
        %v418 = vmul.f32 %v415, %v408
        %v419 = vadd.f32 %v385, %v417
        %v420 = vadd.f32 %v386, %v418
        %421 = vset.pattern.permute.xlu0 3
        %422 = vperm.xlu0 %421, %v314
        %v423 = vpop.permute.xlu0 %422
        %v425 = vlaneseq
        %v426 = vshrl.u32 %v425, 7
        %v427 = vsub.s32 3, %v426
        %v428 = vrot.slane %v297, %v427
        %v429 = vlaneseq
        %v430 = vshrl.u32 %v429, 7
        %v431 = vsub.s32 7, %v430
        %v432 = vrot.slane %v297, %v431
        %v435 = vlaneseq
        %v436 = vshrl.u32 %v435, 7
        %v437 = vsub.s32 3, %v436
        %v438 = vrot.slane %v428, %v437
        %v439 = vlaneseq
        %v440 = vshrl.u32 %v439, 7
        %v441 = vsub.s32 3, %v440
        %v442 = vrot.slane %v432, %v441
        %v443 = vmul.f32 %v423, %v438
        %v444 = vmul.f32 %v423, %v442
        %v445 = vadd.f32 %v411, %v443
        %v446 = vadd.f32 %v412, %v444
        %447 = vset.pattern.permute.xlu0 3
        %448 = vperm.xlu0 %447, %v315
        %v449 = vpop.permute.xlu0 %448
        %v451 = vmul.f32 %v449, %v438
        %v452 = vmul.f32 %v449, %v442
        %v453 = vadd.f32 %v419, %v451
        %v454 = vadd.f32 %v420, %v452
        %v455 = vmul.f32 %v312, %v445
        %v456 = vmul.f32 %v313, %v446
        %v457 = vadd.f32 %v455, %v453
        %v458 = vadd.f32 %v456, %v454
        %459 = vset.pattern.permute.xlu0 2
        %460 = vperm.xlu0 %459, %v300
        %v461 = vpop.permute.xlu0 %460
        %v463 = vmul.f32 %v298, %v461
        %v464 = vmul.f32 %v299, %v461
        %465 = vset.pattern.permute.xlu0 3
        %466 = vperm.xlu0 %465, %v300
        %v467 = vpop.permute.xlu0 %466
        %v469 = vadd.f32 %v463, %v467
        %v470 = vadd.f32 %v464, %v467
        %471 = vset.pattern.permute.xlu0 4
        %472 = vperm.xlu0 %471, %v300
        %v473 = vpop.permute.xlu0 %472
        %v475 = vmul.f32 %v473, %v312
        %v476 = vmul.f32 %v473, %v313
        %v477 = vrot.slane %v475, 4
        %v478 = vadd.f32 %v475, %v477
        %v479 = vrot.slane %v478, 2
        %v480 = vadd.f32 %v478, %v479
        %v481 = vrot.slane %v480, 1
        %v482 = vadd.f32 %v480, %v481
        %v483 = vrot.slane %v476, 4
        %v484 = vadd.f32 %v476, %v483
        %v485 = vrot.slane %v484, 2
        %v486 = vadd.f32 %v484, %v485
        %v487 = vrot.slane %v486, 1
        %v488 = vadd.f32 %v486, %v487
        %v489 = vxor.u32 %v482, 2147483648
        %v490 = vxor.u32 %v488, 2147483648
        %v491 = vmul.f32 %v489, 1.442695
        %v492 = vpow.pop %v491
        %v493 = vmul.f32 %v490, 1.442695
        %v494 = vpow.pop %v493
        %v495 = vadd.f32 %v492, 1.0
        %v496 = vadd.f32 %v494, 1.0
        %v497 = vrcp.pop %v495
        %v498 = vmul.f32 1.0, %v497
        %v499 = vrcp.pop %v496
        %v500 = vmul.f32 1.0, %v499
        %v501 = vsub.f32 %v469, %v457
        %v502 = vsub.f32 %v470, %v458
        %v503 = vmul.f32 %v498, %v501
        %v504 = vmul.f32 %v500, %v502
        %v505 = vadd.f32 %v457, %v503
        %v506 = vadd.f32 %v458, %v504
        %507 = vst [vmem:[%s284] sm:$0xff] %v505
        %508 = vst [vmem:[%s284 + $0x8] sm:$0xff] %v506
        %s509 = sand.u32 %s163, 1
        %s510 = scalar_lea.sflag [#allocation4], %s509
        %s511 = sand.u32 %s163, 1
        %s512 = smul.addr %s511, 16
        %s513 = scalar_lea.vmem [#allocation5], %s512
        // Predicated region
        $region45: #{tpu_custom_call.1} parent=39 // pred_check
          %p514 = pneg %p173
        $region46: #{tpu_custom_call.1} parent=39 // pred_check_branch
          %516 = sbr.rel (%p514) target = $region48
        $region47: #{tpu_custom_call.1} parent=39 // pred_region
          %s517 = smul.u32 2, %s27
          %s519 = ssub.s32 256, 256
          %520 = vsyncadd %s510, %s519
          %s521 = smul.addr %s26, 2
          %s522 = sadd.s32 %s517, %s521
          %s523 = smul.addr %s522, 128
          %s524 = scalar_lea.hbm %s5, %s523
          %s526 = sshll.u32 %s513, 4
          %s527 = int_to_ptr.vmem [resolvable:$true] %s526
          %529 = dma.vmem_to_hbm [thread:$0]  %s527, 256, %s524, %s510
        $region48: #{tpu_custom_call.1} parent=39 // pred_fallthru
          _
      $region40: #{tpu_custom_call.1} parent=5 // pred_fallthru
        _
      %p530 = scmp.le.s32.totalorder 2, %s17
      // Predicated region
      $region49: #{tpu_custom_call.1} parent=5 // pred_check
        %p531 = pneg %p530
      $region50: #{tpu_custom_call.1} parent=5 // pred_check_branch
        %533 = sbr.rel (%p531) target = $region52
      $region51: #{tpu_custom_call.1} parent=5 // pred_region
        %s534 = ssub.s32 %s17, 2
        // Predicated region
        $region53: #{tpu_custom_call.1} parent=51 // pred_check
          %p535 = pneg %p179
        $region54: #{tpu_custom_call.1} parent=51 // pred_check_branch
          %537 = sbr.rel (%p535) target = $region56
        $region55: #{tpu_custom_call.1} parent=51 // pred_region
          %s538 = sand.u32 %s164, 1
          %s539 = scalar_lea.sflag [#allocation4], %s538
          %s540 = sand.u32 %s164, 1
          %s541 = smul.addr %s540, 16
          %s542 = scalar_lea.vmem [#allocation5], %s541
          %543 = dma.done %s539, 256
        $region56: #{tpu_custom_call.1} parent=51 // pred_fallthru
          _
      $region52: #{tpu_custom_call.1} parent=5 // pred_fallthru
        _
    $region6: #{tpu_custom_call.1} parent=1 // loop_footer
      %s21 = sadd.s32 1, %s17
    $region7: #{tpu_custom_call.1} parent=1 // loop_footer_branch
      %16 = sbr.rel target = $region3
    $region8: #{tpu_custom_call.1} parent=1 // loop_exit
      _
    %544 = vsyncpa [#allocation3], 1
    %s545 = scalar_lea.sflag [#allocation3], 1
    %546 = vsyncpa %s545, 1
    %547 = vsyncpa [#allocation4], 1
    %s548 = scalar_lea.sflag [#allocation4], 1
    %549 = vsyncpa %s548, 1

</llo_original>
